<compile_context>
chip_gen: v5e
topology: v5e:2x2
jax: 0.10.0
libtpu: 0.0.40
codegen_flags: <defaults>
</compile_context>

<pallas_src>
import functools

import jax
import jax.numpy as jnp
from jax.experimental import pallas as pl
from jax.experimental.pallas import tpu as pltpu


def _round_up(x, m):
    return ((x + m - 1) // m) * m


def _critic_kernel(s_ref, a_ref,
                   ws_ref, wa_ref, b14_ref,
                   w2_ref, b2_ref, w5_ref, b5_ref,
                   w36_ref, b36_ref,
                   q_ref,
                   *, hidden_dim, compute_dtype):
    # Fused first layer of both heads (shared input), concat-free:
    #   relu([state|action] @ [w1|w4] + [b1|b4])  ==  relu(s@Ws + a@Wa + b14)
    hg = (jnp.dot(s_ref[...], ws_ref[...], preferred_element_type=jnp.float32)
          + jnp.dot(a_ref[...], wa_ref[...], preferred_element_type=jnp.float32)
          + b14_ref[...])
    hg = jnp.maximum(hg, 0.0)                      # f32 bias/ReLU on all generations

    h = hg[:, :hidden_dim].astype(compute_dtype)   # Q1-head hidden
    g = hg[:, hidden_dim:].astype(compute_dtype)   # Q2-head hidden

    h2 = jnp.maximum(
        jnp.dot(h, w2_ref[...], preferred_element_type=jnp.float32) + b2_ref[...], 0.0)
    g2 = jnp.maximum(
        jnp.dot(g, w5_ref[...], preferred_element_type=jnp.float32) + b5_ref[...], 0.0)

    # Fused final layer: block-diagonal [2H, 2] weight -> lane-dense [TB, 2] output.
    hg2 = jnp.concatenate([h2, g2], axis=-1).astype(compute_dtype)
    q = jnp.dot(hg2, w36_ref[...], preferred_element_type=jnp.float32) + b36_ref[...]
    q_ref[...] = q.astype(q_ref.dtype)


def critic_forward(state, action, fused):
    """state: [B, num_inputs], action: [B, num_actions], fused: dict from fuse_critic_params."""
    compute_dtype = fused["ws"].dtype
    H = fused["w2"].shape[0]
    ni = fused["ws"].shape[0]
    na = fused["wa"].shape[0]
    B = state.shape[0]

    # Batch tiling: TB multiple of 8 (f32 sublane), capped at 256 for HBM-roofline tiles.
    TB = min(256, _round_up(max(B, 1), 8))
    B_pad = _round_up(B, TB)

    s = state.astype(compute_dtype)
    a = action.astype(compute_dtype)
    if B_pad != B:
        s = jnp.pad(s, ((0, B_pad - B), (0, 0)))
        a = jnp.pad(a, ((0, B_pad - B), (0, 0)))

    weight_args = (fused["ws"], fused["wa"], fused["b14"],
                   fused["w2"], fused["b2"], fused["w5"], fused["b5"],
                   fused["w36"], fused["b36"])

    # VMEM budget: resident weights + double-buffered row tiles + intermediates,
    # with headroom, capped well under the v7x 64 MiB per-TC ceiling.
    dsize = jnp.dtype(compute_dtype).itemsize
    weight_bytes = sum(int(w.size) * w.dtype.itemsize for w in weight_args)
    act_bytes = 2 * TB * (ni + na) * dsize + 2 * TB * 2 * 4
    scratch_bytes = 6 * TB * 2 * H * 4
    vmem_limit = int(min(max(2 * (weight_bytes + act_bytes + scratch_bytes),
                             32 * 2**20), 60 * 2**20))

    kernel = functools.partial(_critic_kernel, hidden_dim=H, compute_dtype=compute_dtype)

    row_spec = lambda d: pl.BlockSpec((TB, d), lambda i: (i, 0))        # batch-tiled
    const_spec = lambda arr: pl.BlockSpec(arr.shape, lambda i: (0, 0))  # VMEM-resident

    q = pl.pallas_call(
        kernel,
        out_shape=jax.ShapeDtypeStruct((B_pad, 2), jnp.float32),
        grid=(B_pad // TB,),
        in_specs=[row_spec(ni), row_spec(na)] + [const_spec(w) for w in weight_args],
        out_specs=pl.BlockSpec((TB, 2), lambda i: (i, 0)),
        compiler_params=pltpu.CompilerParams(
            dimension_semantics=("parallel",),   # batch tiles split across TCs (v7x megacore)
            vmem_limit_bytes=vmem_limit,
        ),
    )(s, a, *weight_args)

    q = q[:B]
    return q[:, 0:1], q[:, 1:2]


def _xavier_uniform(key, fan_in, fan_out, gain=1.0):
    limit = gain * jnp.sqrt(6.0 / (fan_in + fan_out))
    # Stored as [in, out] (transpose of PyTorch's [out, in]); xavier bound is
    # symmetric in fan_in/fan_out so the distribution matches.
    return jax.random.uniform(key, (fan_in, fan_out), jnp.float32, -limit, limit)


def init_critic_params(key, num_inputs, num_actions, hidden_dim):
    d_in = num_inputs + num_actions
    keys = jax.random.split(key, 6)
    return {
        "w1": _xavier_uniform(keys[0], d_in, hidden_dim),
        "b1": jnp.zeros((1, hidden_dim), jnp.float32),
        "w2": _xavier_uniform(keys[1], hidden_dim, hidden_dim),
        "b2": jnp.zeros((1, hidden_dim), jnp.float32),
        "w3": _xavier_uniform(keys[2], hidden_dim, 1),
        "b3": jnp.zeros((1, 1), jnp.float32),
        "w4": _xavier_uniform(keys[3], d_in, hidden_dim),
        "b4": jnp.zeros((1, hidden_dim), jnp.float32),
        "w5": _xavier_uniform(keys[4], hidden_dim, hidden_dim),
        "b5": jnp.zeros((1, 1 * hidden_dim), jnp.float32),
        "w6": _xavier_uniform(keys[5], hidden_dim, 1),
        "b6": jnp.zeros((1, 1), jnp.float32),
    }


def fuse_critic_params(params, num_inputs, compute_dtype=jnp.bfloat16):
    """Build the fused/split weight layout consumed by the kernel (do this once at init)."""
    H = params["w1"].shape[1]
    w14 = jnp.concatenate([params["w1"], params["w4"]], axis=1)     # [d_in, 2H]
    b14 = jnp.concatenate([params["b1"], params["b4"]], axis=1)     # [1, 2H]
    w36 = jnp.zeros((2 * H, 2), jnp.float32)                        # block-diag [2H, 2]
    w36 = w36.at[:H, 0:1].set(params["w3"]).at[H:, 1:2].set(params["w6"])
    b36 = jnp.concatenate([params["b3"], params["b6"]], axis=1)     # [1, 2]
    return {
        "ws": w14[:num_inputs].astype(compute_dtype),   # state rows of fused L1/L4
        "wa": w14[num_inputs:].astype(compute_dtype),   # action rows of fused L1/L4
        "b14": b14.astype(jnp.float32),
        "w2": params["w2"].astype(compute_dtype),
        "b2": params["b2"].astype(jnp.float32),
        "w5": params["w5"].astype(compute_dtype),
        "b5": params["b5"].astype(jnp.float32),
        "w36": w36.astype(compute_dtype),
        "b36": b36.astype(jnp.float32),
    }


def _reference_forward(state, action, p, compute_dtype=jnp.float32):
    def lin(x, w, b):
        return jnp.dot(x.astype(compute_dtype), w.astype(compute_dtype),
                       preferred_element_type=jnp.float32) + b
    x = jnp.concatenate([state, action], axis=1).astype(jnp.float32)
    h = jax.nn.relu(lin(x, p["w1"], p["b1"]))
    h = jax.nn.relu(lin(h, p["w2"], p["b2"]))
    q1 = lin(h, p["w3"], p["b3"])
    g = jax.nn.relu(lin(x, p["w4"], p["b4"]))
    g = jax.nn.relu(lin(g, p["w5"], p["b5"]))
    q2 = lin(g, p["w6"], p["b6"])
    return q1, q2


if __name__ == "__main__":
    num_inputs, num_actions, hidden_dim = 16, 8, 32
    batch = 2

    key = jax.random.PRNGKey(0)
    k_params, k_state, k_action = jax.random.split(key, 3)

    params = init_critic_params(k_params, num_inputs, num_actions, hidden_dim)
    state = jax.random.normal(k_state, (batch, num_inputs), jnp.float32)
    action = jax.random.normal(k_action, (batch, num_actions), jnp.float32)

    # --- f32 matmul path (exact vs reference) ---
    fused_f32 = fuse_critic_params(params, num_inputs, compute_dtype=jnp.float32)
    q1, q2 = critic_forward(state, action, fused_f32)
    q1 = jax.block_until_ready(q1)
    q2 = jax.block_until_ready(q2)
    r1, r2 = _reference_forward(state, action, params, compute_dtype=jnp.float32)
    assert q1.shape == (batch, 1) and q2.shape == (batch, 1)
    assert jnp.allclose(q1, r1, atol=1e-5), "q1 (f32) mismatch vs reference"
    assert jnp.allclose(q2, r2, atol=1e-5), "q2 (f32) mismatch vs reference"

    # --- bf16 matmul path (MXU-friendly on v6e/v7x; f32 accumulation) ---
    fused_bf16 = fuse_critic_params(params, num_inputs, compute_dtype=jnp.bfloat16)
    q1b, q2b = critic_forward(state, action, fused_bf16)
    q1b = jax.block_until_ready(q1b)
    q2b = jax.block_until_ready(q2b)
    rb1, rb2 = _reference_forward(state, action, params, compute_dtype=jnp.bfloat16)
    assert jnp.allclose(q1b, rb1, atol=1e-3, rtol=1e-2), "q1 (bf16) mismatch vs reference"
    assert jnp.allclose(q2b, rb2, atol=1e-3, rtol=1e-2), "q2 (bf16) mismatch vs reference"

    print("KERNEL_OK")
</pallas_src>

<mosaic_0001>
module attributes {stable_mosaic.version = 11 : i64} {
  func.func @_critic_kernel(%arg0: i32, %arg1: memref<8x16xf32, #tpu.memory_space<vmem>>, %arg2: memref<8x8xf32, #tpu.memory_space<vmem>>, %arg3: memref<16x64xf32, #tpu.memory_space<vmem>>, %arg4: memref<8x64xf32, #tpu.memory_space<vmem>>, %arg5: memref<1x64xf32, #tpu.memory_space<vmem>>, %arg6: memref<32x32xf32, #tpu.memory_space<vmem>>, %arg7: memref<1x32xf32, #tpu.memory_space<vmem>>, %arg8: memref<32x32xf32, #tpu.memory_space<vmem>>, %arg9: memref<1x32xf32, #tpu.memory_space<vmem>>, %arg10: memref<64x2xf32, #tpu.memory_space<vmem>>, %arg11: memref<1x2xf32, #tpu.memory_space<vmem>>, %arg12: memref<8x2xf32, #tpu.memory_space<vmem>>) attributes {dimension_semantics = [#tpu.dimension_semantics<parallel>], iteration_bounds = array<i64: 1>, scalar_prefetch = 0 : i64, scratch_operands = 0 : i64, tpu.core_type = #tpu.core_type<tc>, window_params = [{transform_indices = @transform_0, window_bounds = array<i64: 8, 16>}, {transform_indices = @transform_1, window_bounds = array<i64: 8, 8>}, {pipeline_mode = #tpu.pipeline_mode<synchronous>, transform_indices = @transform_2, window_bounds = array<i64: 16, 64>}, {pipeline_mode = #tpu.pipeline_mode<synchronous>, transform_indices = @transform_3, window_bounds = array<i64: 8, 64>}, {pipeline_mode = #tpu.pipeline_mode<synchronous>, transform_indices = @transform_4, window_bounds = array<i64: 1, 64>}, {pipeline_mode = #tpu.pipeline_mode<synchronous>, transform_indices = @transform_5, window_bounds = array<i64: 32, 32>}, {pipeline_mode = #tpu.pipeline_mode<synchronous>, transform_indices = @transform_6, window_bounds = array<i64: 1, 32>}, {pipeline_mode = #tpu.pipeline_mode<synchronous>, transform_indices = @transform_7, window_bounds = array<i64: 32, 32>}, {pipeline_mode = #tpu.pipeline_mode<synchronous>, transform_indices = @transform_8, window_bounds = array<i64: 1, 32>}, {pipeline_mode = #tpu.pipeline_mode<synchronous>, transform_indices = @transform_9, window_bounds = array<i64: 64, 2>}, {pipeline_mode = #tpu.pipeline_mode<synchronous>, transform_indices = @transform_10, window_bounds = array<i64: 1, 2>}, {transform_indices = @transform_11, window_bounds = array<i64: 8, 2>}]} {
    %c0 = arith.constant 0 : index
    %c0_0 = arith.constant 0 : index
    %0 = vector.load %arg1[%c0, %c0_0] : memref<8x16xf32, #tpu.memory_space<vmem>>, vector<8x16xf32>
    %c0_1 = arith.constant 0 : index
    %c0_2 = arith.constant 0 : index
    %1 = vector.load %arg3[%c0_1, %c0_2] : memref<16x64xf32, #tpu.memory_space<vmem>>, vector<16x64xf32>
    %cst = arith.constant dense<0.000000e+00> : vector<8x64xf32>
    %2 = tpu.matmul %0, %1, %cst {dimension_numbers = #tpu.dot_dimension_numbers<[1], [0], [0], [1], [0, 0, 1, 1], [], []>} : vector<8x16xf32>, vector<16x64xf32>, vector<8x64xf32> -> vector<8x64xf32>
    %c0_3 = arith.constant 0 : index
    %c0_4 = arith.constant 0 : index
    %3 = vector.load %arg2[%c0_3, %c0_4] : memref<8x8xf32, #tpu.memory_space<vmem>>, vector<8x8xf32>
    %c0_5 = arith.constant 0 : index
    %c0_6 = arith.constant 0 : index
    %4 = vector.load %arg4[%c0_5, %c0_6] : memref<8x64xf32, #tpu.memory_space<vmem>>, vector<8x64xf32>
    %cst_7 = arith.constant dense<0.000000e+00> : vector<8x64xf32>
    %5 = tpu.matmul %3, %4, %cst_7 {dimension_numbers = #tpu.dot_dimension_numbers<[1], [0], [0], [1], [0, 0, 1, 1], [], []>} : vector<8x8xf32>, vector<8x64xf32>, vector<8x64xf32> -> vector<8x64xf32>
    %6 = arith.addf %2, %5 : vector<8x64xf32>
    %c0_8 = arith.constant 0 : index
    %c0_9 = arith.constant 0 : index
    %7 = vector.load %arg5[%c0_8, %c0_9] : memref<1x64xf32, #tpu.memory_space<vmem>>, vector<1x64xf32>
    %8 = vector.broadcast %7 : vector<1x64xf32> to vector<8x64xf32>
    %9 = arith.addf %6, %8 : vector<8x64xf32>
    %cst_10 = arith.constant 0.000000e+00 : f32
    %10 = vector.broadcast %cst_10 : f32 to vector<8x64xf32>
    %11 = arith.maximumf %9, %10 : vector<8x64xf32>
    %12 = vector.extract_strided_slice %11 {offsets = [0, 0], sizes = [8, 32], strides = [1, 1]} : vector<8x64xf32> to vector<8x32xf32>
    %13 = vector.extract_strided_slice %11 {offsets = [0, 32], sizes = [8, 32], strides = [1, 1]} : vector<8x64xf32> to vector<8x32xf32>
    %c0_11 = arith.constant 0 : index
    %c0_12 = arith.constant 0 : index
    %14 = vector.load %arg6[%c0_11, %c0_12] : memref<32x32xf32, #tpu.memory_space<vmem>>, vector<32x32xf32>
    %cst_13 = arith.constant dense<0.000000e+00> : vector<8x32xf32>
    %15 = tpu.matmul %12, %14, %cst_13 {dimension_numbers = #tpu.dot_dimension_numbers<[1], [0], [0], [1], [0, 0, 1, 1], [], []>} : vector<8x32xf32>, vector<32x32xf32>, vector<8x32xf32> -> vector<8x32xf32>
    %c0_14 = arith.constant 0 : index
    %c0_15 = arith.constant 0 : index
    %16 = vector.load %arg7[%c0_14, %c0_15] : memref<1x32xf32, #tpu.memory_space<vmem>>, vector<1x32xf32>
    %17 = vector.broadcast %16 : vector<1x32xf32> to vector<8x32xf32>
    %18 = arith.addf %15, %17 : vector<8x32xf32>
    %cst_16 = arith.constant 0.000000e+00 : f32
    %19 = vector.broadcast %cst_16 : f32 to vector<8x32xf32>
    %20 = arith.maximumf %18, %19 : vector<8x32xf32>
    %c0_17 = arith.constant 0 : index
    %c0_18 = arith.constant 0 : index
    %21 = vector.load %arg8[%c0_17, %c0_18] : memref<32x32xf32, #tpu.memory_space<vmem>>, vector<32x32xf32>
    %cst_19 = arith.constant dense<0.000000e+00> : vector<8x32xf32>
    %22 = tpu.matmul %13, %21, %cst_19 {dimension_numbers = #tpu.dot_dimension_numbers<[1], [0], [0], [1], [0, 0, 1, 1], [], []>} : vector<8x32xf32>, vector<32x32xf32>, vector<8x32xf32> -> vector<8x32xf32>
    %c0_20 = arith.constant 0 : index
    %c0_21 = arith.constant 0 : index
    %23 = vector.load %arg9[%c0_20, %c0_21] : memref<1x32xf32, #tpu.memory_space<vmem>>, vector<1x32xf32>
    %24 = vector.broadcast %23 : vector<1x32xf32> to vector<8x32xf32>
    %25 = arith.addf %22, %24 : vector<8x32xf32>
    %cst_22 = arith.constant 0.000000e+00 : f32
    %26 = vector.broadcast %cst_22 : f32 to vector<8x32xf32>
    %27 = arith.maximumf %25, %26 : vector<8x32xf32>
    %28 = tpu.concatenate %20, %27 in 1 : vector<8x32xf32>, vector<8x32xf32> -> vector<8x64xf32>
    %c0_23 = arith.constant 0 : index
    %c0_24 = arith.constant 0 : index
    %29 = vector.load %arg10[%c0_23, %c0_24] : memref<64x2xf32, #tpu.memory_space<vmem>>, vector<64x2xf32>
    %cst_25 = arith.constant dense<0.000000e+00> : vector<8x2xf32>
    %30 = tpu.matmul %28, %29, %cst_25 {dimension_numbers = #tpu.dot_dimension_numbers<[1], [0], [0], [1], [0, 0, 1, 1], [], []>} : vector<8x64xf32>, vector<64x2xf32>, vector<8x2xf32> -> vector<8x2xf32>
    %c0_26 = arith.constant 0 : index
    %c0_27 = arith.constant 0 : index
    %31 = vector.load %arg11[%c0_26, %c0_27] : memref<1x2xf32, #tpu.memory_space<vmem>>, vector<1x2xf32>
    %32 = vector.broadcast %31 : vector<1x2xf32> to vector<8x2xf32>
    %33 = arith.addf %30, %32 : vector<8x2xf32>
    %c0_28 = arith.constant 0 : index
    %c0_29 = arith.constant 0 : index
    %34 = vector.load %arg12[%c0_28, %c0_29] : memref<8x2xf32, #tpu.memory_space<vmem>>, vector<8x2xf32>
    tpu.vector_store %arg12[%c0_28, %c0_29], %33 {strides = array<i32>} : memref<8x2xf32, #tpu.memory_space<vmem>>, vector<8x2xf32>,
    return
  }
  func.func @transform_0(%arg0: i32) -> (i32, i32) {
    %c0_i32 = arith.constant 0 : i32
    %c0_i32_0 = arith.constant 0 : i32
    return %arg0, %c0_i32 : i32, i32
  }
  func.func @transform_1(%arg0: i32) -> (i32, i32) {
    %c0_i32 = arith.constant 0 : i32
    %c0_i32_0 = arith.constant 0 : i32
    return %arg0, %c0_i32 : i32, i32
  }
  func.func @transform_2(%arg0: i32) -> (i32, i32) {
    %c0_i32 = arith.constant 0 : i32
    %c0_i32_0 = arith.constant 0 : i32
    %c0_i32_1 = arith.constant 0 : i32
    return %c0_i32, %c0_i32_0 : i32, i32
  }
  func.func @transform_3(%arg0: i32) -> (i32, i32) {
    %c0_i32 = arith.constant 0 : i32
    %c0_i32_0 = arith.constant 0 : i32
    %c0_i32_1 = arith.constant 0 : i32
    return %c0_i32, %c0_i32_0 : i32, i32
  }
  func.func @transform_4(%arg0: i32) -> (i32, i32) {
    %c0_i32 = arith.constant 0 : i32
    %c0_i32_0 = arith.constant 0 : i32
    %c0_i32_1 = arith.constant 0 : i32
    return %c0_i32, %c0_i32_0 : i32, i32
  }
  func.func @transform_5(%arg0: i32) -> (i32, i32) {
    %c0_i32 = arith.constant 0 : i32
    %c0_i32_0 = arith.constant 0 : i32
    %c0_i32_1 = arith.constant 0 : i32
    return %c0_i32, %c0_i32_0 : i32, i32
  }
  func.func @transform_6(%arg0: i32) -> (i32, i32) {
    %c0_i32 = arith.constant 0 : i32
    %c0_i32_0 = arith.constant 0 : i32
    %c0_i32_1 = arith.constant 0 : i32
    return %c0_i32, %c0_i32_0 : i32, i32
  }
  func.func @transform_7(%arg0: i32) -> (i32, i32) {
    %c0_i32 = arith.constant 0 : i32
    %c0_i32_0 = arith.constant 0 : i32
    %c0_i32_1 = arith.constant 0 : i32
    return %c0_i32, %c0_i32_0 : i32, i32
  }
  func.func @transform_8(%arg0: i32) -> (i32, i32) {
    %c0_i32 = arith.constant 0 : i32
    %c0_i32_0 = arith.constant 0 : i32
    %c0_i32_1 = arith.constant 0 : i32
    return %c0_i32, %c0_i32_0 : i32, i32
  }
  func.func @transform_9(%arg0: i32) -> (i32, i32) {
    %c0_i32 = arith.constant 0 : i32
    %c0_i32_0 = arith.constant 0 : i32
    %c0_i32_1 = arith.constant 0 : i32
    return %c0_i32, %c0_i32_0 : i32, i32
  }
  func.func @transform_10(%arg0: i32) -> (i32, i32) {
    %c0_i32 = arith.constant 0 : i32
    %c0_i32_0 = arith.constant 0 : i32
    %c0_i32_1 = arith.constant 0 : i32
    return %c0_i32, %c0_i32_0 : i32, i32
  }
  func.func @transform_11(%arg0: i32) -> (i32, i32) {
    %c0_i32 = arith.constant 0 : i32
    %c0_i32_0 = arith.constant 0 : i32
    return %arg0, %c0_i32 : i32, i32
  }
}

</mosaic_0001>

<llo_original>
// kernel: tpu_custom_call.1
$region0: #{tpu_custom_call.1}
  #allocation0 [shape = 'u32[]', space=smem, size = 0x4, offset = 0x4, fixed_abs, tag = 'smem constant byte address 0x4 - core index']
  #allocation1 [shape = 'u32[72,128]{1,0:T(1,128)}', space=vmem, size = 0x9000, scoped, tag = 'internal scratch']
  %s0 = inlined_call_operand.hbm [shape: f32[8,16], index: 0, kind: input, shape index: {}]
  %s1 = inlined_call_operand.hbm [shape: f32[8,8], index: 1, kind: input, shape index: {}]
  %s2 = inlined_call_operand.hbm [shape: f32[16,64], index: 2, kind: input, shape index: {}]
  %s3 = inlined_call_operand.hbm [shape: f32[8,64], index: 3, kind: input, shape index: {}]
  %s4 = inlined_call_operand.vmem [shape: f32[1,64], index: 4, kind: input, shape index: {}]
  %s5 = inlined_call_operand.vmem [shape: f32[32,32], index: 5, kind: input, shape index: {}]
  %s6 = inlined_call_operand.vmem [shape: f32[1,32], index: 6, kind: input, shape index: {}]
  %s7 = inlined_call_operand.vmem [shape: f32[32,32], index: 7, kind: input, shape index: {}]
  %s8 = inlined_call_operand.vmem [shape: f32[1,32], index: 8, kind: input, shape index: {}]
  %s9 = inlined_call_operand.vmem [shape: f32[64,2], index: 9, kind: input, shape index: {}]
  %s10 = inlined_call_operand.vmem [shape: f32[1,2], index: 10, kind: input, shape index: {}]
  %s11 = inlined_call_operand.vmem [shape: f32[8,2], index: 11, kind: output, shape index: {}]
  %s12 = sld [smem:[#allocation0]]
  $region70: #{tpu_custom_call.1} parent=0
    _
  %s14 = ssub.s32 1, %s12
  %s15 = scalar_select 0, %s14, %s12
  $region1: #{tpu_custom_call.1} parent=0
    #allocation2 [shape = 'u8[4096]{0}', space=vmem, size = 0x1000, scoped, tag = 'input window, operand 0, single buffered']
    #allocation3 [shape = 's32[1]{0}', space=sflag, size = 0x4, scoped, tag = 'scoped memory for tpu_custom_call.1']
    #allocation4 [shape = 'u8[4096]{0}', space=vmem, size = 0x1000, scoped, tag = 'input window, operand 1, single buffered']
    #allocation5 [shape = 's32[1]{0}', space=sflag, size = 0x4, scoped, tag = 'scoped memory for tpu_custom_call.1']
    #allocation6 [shape = 'u8[8192]{0}', space=vmem, size = 0x2000, scoped, tag = 'input window, operand 2, single buffered']
    #allocation7 [shape = 'u8[4096]{0}', space=vmem, size = 0x1000, scoped, tag = 'input window, operand 3, single buffered']
    #allocation8 [shape = 's32[1]{0}', space=sflag, size = 0x4, scoped, tag = 'scoped memory for tpu_custom_call.1']
    %16 = vsyncpa [#allocation3], 0
    %17 = vsyncpa [#allocation5], 0
    %18 = vsyncpa [#allocation8], 0
    // Predicated region
    $region2: #{tpu_custom_call.1} parent=1 // pred_check
      _
    $region3: #{tpu_custom_call.1} parent=1 // pred_check_branch
      %20 = sbr.rel (0) target = $region5
    $region4: #{tpu_custom_call.1} parent=1 // pred_region
      %22 = vsyncadd [#allocation3], 0
      %s24 = sshll.u32 %s0, 4
      %s25 = int_to_ptr.hbm [resolvable:$true] %s24
      %s26 = sshll.u32 [#allocation2], 4
      %s27 = int_to_ptr.vmem [resolvable:$true] %s26
      %29 = dma.hbm_to_vmem [thread:$0]  %s25, 128, %s27, [#allocation3]
    $region5: #{tpu_custom_call.1} parent=1 // pred_fallthru
      _
    // Predicated region
    $region6: #{tpu_custom_call.1} parent=1 // pred_check
      _
    $region7: #{tpu_custom_call.1} parent=1 // pred_check_branch
      %31 = sbr.rel (0) target = $region9
    $region8: #{tpu_custom_call.1} parent=1 // pred_region
      %33 = vsyncadd [#allocation5], 0
      %s35 = sshll.u32 %s1, 4
      %s36 = int_to_ptr.hbm [resolvable:$true] %s35
      %s37 = sshll.u32 [#allocation4], 4
      %s38 = int_to_ptr.vmem [resolvable:$true] %s37
      %40 = dma.hbm_to_vmem [thread:$0]  %s36, 128, %s38, [#allocation5]
    $region9: #{tpu_custom_call.1} parent=1 // pred_fallthru
      _
    // Predicated region
    $region10: #{tpu_custom_call.1} parent=1 // pred_check
      _
    $region11: #{tpu_custom_call.1} parent=1 // pred_check_branch
      %42 = sbr.rel (0) target = $region13
    $region12: #{tpu_custom_call.1} parent=1 // pred_region
      %44 = vsyncadd [#allocation5], 0
      %s45 = sshll.u32 %s2, 4
      %s46 = int_to_ptr.hbm [resolvable:$true] %s45
      %s47 = sshll.u32 [#allocation6], 4
      %s48 = int_to_ptr.vmem [resolvable:$true] %s47
      %53 = dma.hbm_to_vmem [thread:$0]  %s46, 256, %s48, [#allocation5], 128, 128, 8
    $region13: #{tpu_custom_call.1} parent=1 // pred_fallthru
      _
    // Predicated region
    $region14: #{tpu_custom_call.1} parent=1 // pred_check
      _
    $region15: #{tpu_custom_call.1} parent=1 // pred_check_branch
      %55 = sbr.rel (0) target = $region17
    $region16: #{tpu_custom_call.1} parent=1 // pred_region
      %57 = vsyncadd [#allocation8], 0
      %s59 = sshll.u32 %s3, 4
      %s60 = int_to_ptr.hbm [resolvable:$true] %s59
      %s61 = sshll.u32 [#allocation7], 4
      %s62 = int_to_ptr.vmem [resolvable:$true] %s61
      %64 = dma.hbm_to_vmem [thread:$0]  %s60, 128, %s62, [#allocation8]
    $region17: #{tpu_custom_call.1} parent=1 // pred_fallthru
      _
    // Predicated region
    $region18: #{tpu_custom_call.1} parent=1 // pred_check
      _
    $region19: #{tpu_custom_call.1} parent=1 // pred_check_branch
      %66 = sbr.rel (0) target = $region21
    $region20: #{tpu_custom_call.1} parent=1 // pred_region
      _
    $region21: #{tpu_custom_call.1} parent=1 // pred_fallthru
      _
    // Predicated region
    $region22: #{tpu_custom_call.1} parent=1 // pred_check
      _
    $region23: #{tpu_custom_call.1} parent=1 // pred_check_branch
      %68 = sbr.rel (0) target = $region25
    $region24: #{tpu_custom_call.1} parent=1 // pred_region
      _
    $region25: #{tpu_custom_call.1} parent=1 // pred_fallthru
      _
    // Predicated region
    $region26: #{tpu_custom_call.1} parent=1 // pred_check
      _
    $region27: #{tpu_custom_call.1} parent=1 // pred_check_branch
      %70 = sbr.rel (0) target = $region29
    $region28: #{tpu_custom_call.1} parent=1 // pred_region
      _
    $region29: #{tpu_custom_call.1} parent=1 // pred_fallthru
      _
    // Predicated region
    $region30: #{tpu_custom_call.1} parent=1 // pred_check
      _
    $region31: #{tpu_custom_call.1} parent=1 // pred_check_branch
      %72 = sbr.rel (0) target = $region33
    $region32: #{tpu_custom_call.1} parent=1 // pred_region
      _
    $region33: #{tpu_custom_call.1} parent=1 // pred_fallthru
      _
    // Predicated region
    $region34: #{tpu_custom_call.1} parent=1 // pred_check
      _
    $region35: #{tpu_custom_call.1} parent=1 // pred_check_branch
      %74 = sbr.rel (0) target = $region37
    $region36: #{tpu_custom_call.1} parent=1 // pred_region
      _
    $region37: #{tpu_custom_call.1} parent=1 // pred_fallthru
      _
    // Predicated region
    $region38: #{tpu_custom_call.1} parent=1 // pred_check
      _
    $region39: #{tpu_custom_call.1} parent=1 // pred_check_branch
      %76 = sbr.rel (0) target = $region41
    $region40: #{tpu_custom_call.1} parent=1 // pred_region
      _
    $region41: #{tpu_custom_call.1} parent=1 // pred_fallthru
      _
    // Predicated region
    $region42: #{tpu_custom_call.1} parent=1 // pred_check
      _
    $region43: #{tpu_custom_call.1} parent=1 // pred_check_branch
      %78 = sbr.rel (0) target = $region45
    $region44: #{tpu_custom_call.1} parent=1 // pred_region
      _
    $region45: #{tpu_custom_call.1} parent=1 // pred_fallthru
      _
    // Predicated region
    $region46: #{tpu_custom_call.1} parent=1 // pred_check
      _
    $region47: #{tpu_custom_call.1} parent=1 // pred_check_branch
      %80 = sbr.rel (0) target = $region49
    $region48: #{tpu_custom_call.1} parent=1 // pred_region
      %82 = dma.done [#allocation3], 128
    $region49: #{tpu_custom_call.1} parent=1 // pred_fallthru
      _
    // Predicated region
    $region50: #{tpu_custom_call.1} parent=1 // pred_check
      _
    $region51: #{tpu_custom_call.1} parent=1 // pred_check_branch
      %84 = sbr.rel (0) target = $region53
    $region52: #{tpu_custom_call.1} parent=1 // pred_region
      %86 = dma.done [#allocation5], 128
    $region53: #{tpu_custom_call.1} parent=1 // pred_fallthru
      _
    // Predicated region
    $region54: #{tpu_custom_call.1} parent=1 // pred_check
      _
    $region55: #{tpu_custom_call.1} parent=1 // pred_check_branch
      %88 = sbr.rel (0) target = $region57
    $region56: #{tpu_custom_call.1} parent=1 // pred_region
      %90 = dma.done [#allocation5], 256
    $region57: #{tpu_custom_call.1} parent=1 // pred_fallthru
      _
    // Predicated region
    $region58: #{tpu_custom_call.1} parent=1 // pred_check
      _
    $region59: #{tpu_custom_call.1} parent=1 // pred_check_branch
      %92 = sbr.rel (0) target = $region61
    $region60: #{tpu_custom_call.1} parent=1 // pred_region
      %94 = dma.done [#allocation8], 128
    $region61: #{tpu_custom_call.1} parent=1 // pred_fallthru
      _
    %v95 = vld [vmem:[#allocation2] sm:$0xff]
    %v96 = vld [vmem:[#allocation6] sm:$0xff]
    %v97 = vld [vmem:[#allocation6 + $0x8] sm:$0xff]
    %v98 = vld [vmem:[#allocation4] sm:$0xff]
    %v99 = vld [vmem:[#allocation7] sm:$0xff]
    %vm100 = vcmask 64512
    %v102 = vsel %vm100, %v98, 0
    %104 = vmatpush.msra.mxu0 0.0
    %105 = vmatpush.msra.mxu0 0.0
    %106 = vmatpush.msra.mxu0 0.0
    %107 = vmatpush.msra.mxu0 0.0
    %108 = vmatpush.msra.mxu0 0.0
    %109 = vmatpush.msra.mxu0 0.0
    %110 = vmatpush.msra.mxu0 0.0
    %111 = vmatpush.msra.mxu0 0.0
    %112 = vmatpush.msra.mxu0 0.0
    %113 = vmatpush.msra.mxu0 0.0
    %114 = vmatpush.msra.mxu0 0.0
    %115 = vmatpush.msra.mxu0 0.0
    %116 = vmatpush.msra.mxu0 0.0
    %117 = vmatpush.msra.mxu0 0.0
    %118 = vmatpush.msra.mxu0 0.0
    %119 = vmatpush.msra.mxu0 %v99
    %120 = vmatmul.f32.gmra.mxu0 %v102
    %v121 = vpop.f32.mrf.mxu0
    %v122 = vadd.f32 0.0, %v121
    %123 = vdwg.mxu0
    %vm124 = vcmask 130048
    %v126 = vsel %vm124, %v95, 0
    %128 = vmatpush.msra.mxu0 0.0
    %129 = vmatpush.msra.mxu0 0.0
    %130 = vmatpush.msra.mxu0 0.0
    %131 = vmatpush.msra.mxu0 0.0
    %132 = vmatpush.msra.mxu0 0.0
    %133 = vmatpush.msra.mxu0 0.0
    %134 = vmatpush.msra.mxu0 0.0
    %135 = vmatpush.msra.mxu0 0.0
    %136 = vmatpush.msra.mxu0 0.0
    %137 = vmatpush.msra.mxu0 0.0
    %138 = vmatpush.msra.mxu0 0.0
    %139 = vmatpush.msra.mxu0 0.0
    %140 = vmatpush.msra.mxu0 0.0
    %141 = vmatpush.msra.mxu0 0.0
    %142 = vmatpush.msra.mxu0 %v97
    %143 = vmatpush.msra.mxu0 %v96
    %144 = vmatmul.f32.gmra.mxu0 %v126
    %v145 = vpop.f32.mrf.mxu0
    %v146 = vadd.f32 %v122, %v145
    %147 = vdwg.mxu0
    %v148 = vld [vmem:[%s4] sm:$0x1]
    %v150 = vperm.slane %v148, 0
    %v152 = vadd.f32 %v146, %v150
    %v153 = vmax.f32 %v152, 0.0
    %v154 = vld [vmem:[%s5] sm:$0xff]
    %v155 = vld [vmem:[%s5 + $0x8] sm:$0xff]
    %v156 = vld [vmem:[%s5 + $0x10] sm:$0xff]
    %v157 = vld [vmem:[%s5 + $0x18] sm:$0xff]
    %v158 = vld [vmem:[%s6] sm:$0x1]
    %v160 = vperm.slane %v158, 0
    %vm162 = vcmask 261120
    %v164 = vsel %vm162, %v153, 0
    %166 = vmatpush.msra.mxu0 0.0
    %167 = vmatpush.msra.mxu0 0.0
    %168 = vmatpush.msra.mxu0 0.0
    %169 = vmatpush.msra.mxu0 0.0
    %170 = vmatpush.msra.mxu0 0.0
    %171 = vmatpush.msra.mxu0 0.0
    %172 = vmatpush.msra.mxu0 0.0
    %173 = vmatpush.msra.mxu0 0.0
    %174 = vmatpush.msra.mxu0 0.0
    %175 = vmatpush.msra.mxu0 0.0
    %176 = vmatpush.msra.mxu0 0.0
    %177 = vmatpush.msra.mxu0 0.0
    %178 = vmatpush.msra.mxu0 %v157
    %179 = vmatpush.msra.mxu0 %v156
    %180 = vmatpush.msra.mxu0 %v155
    %181 = vmatpush.msra.mxu0 %v154
    %182 = vmatmul.f32.gmra.mxu0 %v164
    %v183 = vpop.f32.mrf.mxu0
    %v184 = vadd.f32 %v160, %v183
    %185 = vdwg.mxu0
    %v186 = vmax.f32 %v184, 0.0
    %v187 = vld [vmem:[%s7] sm:$0xff]
    %v188 = vld [vmem:[%s7 + $0x8] sm:$0xff]
    %v189 = vld [vmem:[%s7 + $0x10] sm:$0xff]
    %v190 = vld [vmem:[%s7 + $0x18] sm:$0xff]
    %v191 = vld [vmem:[%s8] sm:$0x1]
    %v193 = vperm.slane %v191, 0
    %195 = vrot.lane.b32.xlu0 %v153, 96
    %v196 = vpop.permute.xlu0 %195
    %v197 = vsel %vm162, %v196, 0
    %199 = vmatpush.msra.mxu0 0.0
    %200 = vmatpush.msra.mxu0 0.0
    %201 = vmatpush.msra.mxu0 0.0
    %202 = vmatpush.msra.mxu0 0.0
    %203 = vmatpush.msra.mxu0 0.0
    %204 = vmatpush.msra.mxu0 0.0
    %205 = vmatpush.msra.mxu0 0.0
    %206 = vmatpush.msra.mxu0 0.0
    %207 = vmatpush.msra.mxu0 0.0
    %208 = vmatpush.msra.mxu0 0.0
    %209 = vmatpush.msra.mxu0 0.0
    %210 = vmatpush.msra.mxu0 0.0
    %211 = vmatpush.msra.mxu0 %v190
    %212 = vmatpush.msra.mxu0 %v189
    %213 = vmatpush.msra.mxu0 %v188
    %214 = vmatpush.msra.mxu0 %v187
    %215 = vmatmul.f32.gmra.mxu0 %v197
    %v216 = vpop.f32.mrf.mxu0
    %v217 = vadd.f32 %v193, %v216
    %218 = vdwg.mxu0
    %v219 = vmax.f32 %v217, 0.0
    %221 = vrot.lane.b32.xlu0 %v219, 32
    %v222 = vpop.permute.xlu0 %221
    %v224 = vsel %vm162, %v186, %v222
    %v225 = vld [vmem:[%s9] sm:$0xff]
    %v226 = vld [vmem:[%s9 + $0x8] sm:$0xff]
    %v227 = vld [vmem:[%s9 + $0x10] sm:$0xff]
    %v228 = vld [vmem:[%s9 + $0x18] sm:$0xff]
    %v229 = vld [vmem:[%s9 + $0x20] sm:$0xff]
    %v230 = vld [vmem:[%s9 + $0x28] sm:$0xff]
    %v231 = vld [vmem:[%s9 + $0x30] sm:$0xff]
    %v232 = vld [vmem:[%s9 + $0x38] sm:$0xff]
    %v233 = vld [vmem:[%s10] sm:$0x1]
    %v235 = vperm.slane %v233, 0
    %vm237 = vcmask 523264
    %v239 = vsel %vm237, %v224, 0
    %241 = vmatpush.msra.mxu0 0.0
    %242 = vmatpush.msra.mxu0 0.0
    %243 = vmatpush.msra.mxu0 0.0
    %244 = vmatpush.msra.mxu0 0.0
    %245 = vmatpush.msra.mxu0 0.0
    %246 = vmatpush.msra.mxu0 0.0
    %247 = vmatpush.msra.mxu0 0.0
    %248 = vmatpush.msra.mxu0 0.0
    %249 = vmatpush.msra.mxu0 %v232
    %250 = vmatpush.msra.mxu0 %v231
    %251 = vmatpush.msra.mxu0 %v230
    %252 = vmatpush.msra.mxu0 %v229
    %253 = vmatpush.msra.mxu0 %v228
    %254 = vmatpush.msra.mxu0 %v227
    %255 = vmatpush.msra.mxu0 %v226
    %256 = vmatpush.msra.mxu0 %v225
    %257 = vmatmul.f32.gmra.mxu0 %v239
    %v258 = vpop.f32.mrf.mxu0
    %v259 = vadd.f32 %v235, %v258
    %260 = vdwg.mxu0
    %vm261 = vcmask 15360
    %262 = vst.msk [vmem:[%s11] sm:$0xff] %vm261, %v259
    // Predicated region
    $region62: #{tpu_custom_call.1} parent=1 // pred_check
      _
    $region63: #{tpu_custom_call.1} parent=1 // pred_check_branch
      %264 = sbr.rel (0) target = $region65
    $region64: #{tpu_custom_call.1} parent=1 // pred_region
      _
    $region65: #{tpu_custom_call.1} parent=1 // pred_fallthru
      _
    // Predicated region
    $region66: #{tpu_custom_call.1} parent=1 // pred_check
      _
    $region67: #{tpu_custom_call.1} parent=1 // pred_check_branch
      %266 = sbr.rel (0) target = $region69
    $region68: #{tpu_custom_call.1} parent=1 // pred_region
      _
    $region69: #{tpu_custom_call.1} parent=1 // pred_fallthru
      _
    %267 = vsyncpa [#allocation3], 1
    %268 = vsyncpa [#allocation5], 1
    %269 = vsyncpa [#allocation8], 1

</llo_original>
